<compile_context>
chip_gen: v5e
topology: v5e:2x2
jax: 0.10.0
libtpu: 0.0.40
codegen_flags: <defaults>
</compile_context>

<pallas_src>
import functools
import jax
import jax.numpy as jnp
from jax.experimental import pallas as pl
from jax.experimental.pallas import tpu as pltpu


def _round_up(x, m):
    return (x + m - 1) // m * m


def rainbow_mlp_kernel(x_ref,
                       w0_ref, b0_ref,
                       w1_ref, b1_ref,
                       w2_ref, b2_ref,
                       wh_ref, bh_ref,
                       wo_ref, bo_ref,
                       out_ref, *, compute_dtype):
    """One batch tile: encoder + fused dueling head matmul chain.

    bf16 (compute_dtype) operands on the MXU, f32 accumulation / bias / ReLU.
    """
    def lin_relu(h, w_ref, b_ref):
        y = jnp.dot(h.astype(compute_dtype), w_ref[...],
                    preferred_element_type=jnp.float32) + b_ref[...]
        return jnp.maximum(y, 0.0)

    h = lin_relu(x_ref[...], w0_ref, b0_ref)   # (TB, 128)   encoder.init + ReLU
    h = lin_relu(h, w1_ref, b1_ref)            # (TB, 128)   encoder.main[0] + ReLU
    h = lin_relu(h, w2_ref, b2_ref)            # (TB, 128p)  encoder.main[2] (64->pad 128) + ReLU
    h = lin_relu(h, wh_ref, bh_ref)            # (TB, 128p)  head hidden, fused [A | Q] + ReLU
    # fused block-diagonal head output, no activation:  [A*n_atom | n_atom | zero pad]
    out_ref[...] = (jnp.dot(h.astype(compute_dtype), wo_ref[...],
                            preferred_element_type=jnp.float32) + bo_ref[...])


def rainbow_dqn_forward(x, params, action_shape, n_atom=51, v_min=-10.0, v_max=10.0,
                        batch_tile=None, compute_dtype=jnp.bfloat16, eps=1e-6):
    """RainbowDQN forward (int obs_shape path).

    params: [(w, b)] for encoder.init, encoder.main[0], encoder.main[2],
            head.A mlp, head.A out, head.Q mlp, head.Q out.
            Every w is stored (in_features, out_features); y = x @ w + b.
    """
    B, obs_dim = x.shape
    A = int(action_shape)
    (w0, b0), (w1, b1), (w2, b2), (wa1, ba1), (wa2, ba2), (wq1, bq1), (wq2, bq2) = params

    H0 = w0.shape[1]
    H1 = w1.shape[1]
    HH = w2.shape[1]                 # head_hidden_size (= encoder_hidden_size_list[-1])
    assert wa1.shape == (HH, HH) and wq1.shape == (HH, HH)
    AQ = A * n_atom                  # advantage-stream flat width
    OUT = AQ + n_atom                # [A-stream | Q-stream]

    # ---- exact zero-padding / stream fusion to 128-lane multiples ----
    HHP = _round_up(HH, 128)         # padded encoder output / head input
    HFP = _round_up(2 * HH, 128)     # fused head hidden width [A | Q]
    OUTP = _round_up(OUT, 128)       # fused output slab width

    def pad_w(w, rows, cols):
        w = jnp.asarray(w, jnp.float32)
        return jnp.pad(w, ((0, rows - w.shape[0]), (0, cols - w.shape[1])))

    def pad_b(b, cols):
        b = jnp.asarray(b, jnp.float32).reshape(1, -1)
        return jnp.pad(b, ((0, 0), (0, cols - b.shape[1])))

    w2p = pad_w(w2, H1, HHP)
    b2p = pad_b(b2, HHP)

    # fused head hidden: cols [0,HH) = A-stream MLP, cols [HH,2HH) = Q-stream MLP
    wh = jnp.zeros((HHP, HFP), jnp.float32)
    wh = wh.at[:HH, :HH].set(jnp.asarray(wa1, jnp.float32))
    wh = wh.at[:HH, HH:2 * HH].set(jnp.asarray(wq1, jnp.float32))
    bh = jnp.zeros((1, HFP), jnp.float32)
    bh = bh.at[0, :HH].set(jnp.ravel(jnp.asarray(ba1, jnp.float32)))
    bh = bh.at[0, HH:2 * HH].set(jnp.ravel(jnp.asarray(bq1, jnp.float32)))

    # fused block-diagonal head output:
    #   rows [0,HH)   -> A cols [0, AQ)
    #   rows [HH,2HH) -> Q cols [AQ, OUT)
    wo = jnp.zeros((HFP, OUTP), jnp.float32)
    wo = wo.at[:HH, :AQ].set(jnp.asarray(wa2, jnp.float32))
    wo = wo.at[HH:2 * HH, AQ:OUT].set(jnp.asarray(wq2, jnp.float32))
    bo = jnp.zeros((1, OUTP), jnp.float32)
    bo = bo.at[0, :AQ].set(jnp.ravel(jnp.asarray(ba2, jnp.float32)))
    bo = bo.at[0, AQ:OUT].set(jnp.ravel(jnp.asarray(bq2, jnp.float32)))

    # ---- dtypes + batch tiling ----
    cdt = compute_dtype
    weights = [jnp.asarray(w0, jnp.float32).astype(cdt),
               jnp.asarray(w1, jnp.float32).astype(cdt),
               w2p.astype(cdt), wh.astype(cdt), wo.astype(cdt)]
    biases = [pad_b(b0, H0), pad_b(b1, H1), b2p, bh, bo]   # biases stay f32

    if batch_tile is None:
        # MXU-filling tiles for real batches (cap 256 keeps v7x's 64 MiB VMEM trivially
        # satisfied and leaves >=2 grid steps for 2-TC sharding at large B); callers on
        # v5e/v6e may pass a larger batch_tile (VMEM headroom is huge).
        batch_tile = min(_round_up(max(B, 1), 16), 256)
    TB = batch_tile
    B_pad = _round_up(B, TB)
    x_p = jnp.pad(jnp.asarray(x).astype(cdt), ((0, B_pad - B), (0, 0)))

    grid = (B_pad // TB,)

    def row_map(i):
        return (i, 0)

    def const_map(i):
        return (0, 0)

    # Constant-index weight blocks are DMA'd once by the pipeline (block index never
    # changes across grid steps), so explicit single-buffering is not required.
    in_specs = [pl.BlockSpec((TB, obs_dim), row_map)]
    ins = [x_p]
    for w, b in zip(weights, biases):
        in_specs.append(pl.BlockSpec(w.shape, const_map))
        in_specs.append(pl.BlockSpec(b.shape, const_map))
        ins.append(w)
        ins.append(b)

    kernel = functools.partial(rainbow_mlp_kernel, compute_dtype=cdt)

    out = pl.pallas_call(
        kernel,
        grid=grid,
        in_specs=in_specs,
        out_specs=pl.BlockSpec((TB, OUTP), row_map),
        out_shape=jax.ShapeDtypeStruct((B_pad, OUTP), jnp.float32),
        compiler_params=pltpu.CompilerParams(
            dimension_semantics=("parallel",),
            vmem_limit_bytes=32 * 1024 * 1024,
        ),
    )(*ins)

    # ---- tiny dueling / C51 epilogue in plain JAX (lane-sparse, O(B*A*n_atom)) ----
    out = out[:B]
    a = out[:, :AQ].reshape(B, A, n_atom)
    q = out[:, AQ:OUT].reshape(B, 1, n_atom)
    dist_logits = q + a - jnp.mean(a, axis=1, keepdims=True)
    dist = jax.nn.softmax(dist_logits, axis=-1) + eps
    support = jnp.linspace(v_min, v_max, n_atom, dtype=jnp.float32)
    logit = jnp.sum(dist * support, axis=-1)
    return {"logit": logit, "distribution": dist}


def init_linear(key, fan_in, fan_out):
    """Deterministic init mimicking nn.Linear default: U(-1/sqrt(in), 1/sqrt(in))."""
    kw, kb = jax.random.split(key)
    bound = 1.0 / jnp.sqrt(float(fan_in))
    w = jax.random.uniform(kw, (fan_in, fan_out), jnp.float32, -bound, bound)
    b = jax.random.uniform(kb, (fan_out,), jnp.float32, -bound, bound)
    return w, b


if __name__ == "__main__":
    # Small, module-consistent shapes (int obs_shape -> FCEncoder path).
    B = 4
    obs_dim = 16
    A = 6                       # action_shape
    n_atom = 51                 # default
    v_min, v_max = -10.0, 10.0
    enc_hidden = [128, 128, 64]
    HH = enc_hidden[-1]         # head_hidden_size

    key = jax.random.PRNGKey(0)
    kx, k0, k1, k2, k3, k4, k5, k6 = jax.random.split(key, 8)

    x = jax.random.normal(kx, (B, obs_dim), dtype=jnp.float32)

    params = [
        init_linear(k0, obs_dim, enc_hidden[0]),      # encoder.init
        init_linear(k1, enc_hidden[0], enc_hidden[1]),# encoder.main[0]
        init_linear(k2, enc_hidden[1], enc_hidden[2]),# encoder.main[2]
        init_linear(k3, HH, HH),                      # head.A mlp (noisy layer, eval: mu)
        init_linear(k4, HH, A * n_atom),              # head.A out
        init_linear(k5, HH, HH),                      # head.Q mlp (noisy layer, eval: mu)
        init_linear(k6, HH, n_atom),                  # head.Q out
    ]

    out = rainbow_dqn_forward(x, params, action_shape=A, n_atom=n_atom,
                              v_min=v_min, v_max=v_max)
    out = jax.block_until_ready(out)

    # ---- pure-JAX reference with identical bf16 operands / f32 accumulation ----
    cdt = jnp.bfloat16

    def lin(h, w, b, relu):
        y = jnp.dot(h.astype(cdt), w.astype(cdt),
                    preferred_element_type=jnp.float32) + b.reshape(1, -1)
        return jnp.maximum(y, 0.0) if relu else y

    (w0, b0), (w1, b1), (w2, b2), (wa1, ba1), (wa2, ba2), (wq1, bq1), (wq2, bq2) = params
    h = lin(x, w0, b0, True)
    h = lin(h, w1, b1, True)
    h = lin(h, w2, b2, True)
    a_ref = lin(lin(h, wa1, ba1, True), wa2, ba2, False).reshape(B, A, n_atom)
    q_ref = lin(lin(h, wq1, bq1, True), wq2, bq2, False).reshape(B, 1, n_atom)
    dist_ref = jax.nn.softmax(q_ref + a_ref - a_ref.mean(axis=1, keepdims=True),
                              axis=-1) + 1e-6
    support = jnp.linspace(v_min, v_max, n_atom, dtype=jnp.float32)
    logit_ref = (dist_ref * support).sum(-1)

    assert out["logit"].shape == (B, A)
    assert out["distribution"].shape == (B, A, n_atom)
    assert bool(jnp.all(jnp.isfinite(out["distribution"])))
    assert bool(jnp.allclose(out["distribution"], dist_ref, atol=1e-4))
    assert bool(jnp.allclose(out["logit"], logit_ref, atol=1e-3))

    print("KERNEL_OK")
</pallas_src>

<mosaic_0001>
module attributes {stable_mosaic.version = 11 : i64} {
  func.func @rainbow_mlp_kernel(%arg0: i32, %arg1: memref<16x16xbf16, #tpu.memory_space<vmem>>, %arg2: memref<16x128xbf16, #tpu.memory_space<vmem>>, %arg3: memref<1x128xf32, #tpu.memory_space<vmem>>, %arg4: memref<128x128xbf16, #tpu.memory_space<vmem>>, %arg5: memref<1x128xf32, #tpu.memory_space<vmem>>, %arg6: memref<128x128xbf16, #tpu.memory_space<vmem>>, %arg7: memref<1x128xf32, #tpu.memory_space<vmem>>, %arg8: memref<128x128xbf16, #tpu.memory_space<vmem>>, %arg9: memref<1x128xf32, #tpu.memory_space<vmem>>, %arg10: memref<128x384xbf16, #tpu.memory_space<vmem>>, %arg11: memref<1x384xf32, #tpu.memory_space<vmem>>, %arg12: memref<16x384xf32, #tpu.memory_space<vmem>>) attributes {dimension_semantics = [#tpu.dimension_semantics<parallel>], iteration_bounds = array<i64: 1>, scalar_prefetch = 0 : i64, scratch_operands = 0 : i64, tpu.core_type = #tpu.core_type<tc>, window_params = [{transform_indices = @transform_0, window_bounds = array<i64: 16, 16>}, {pipeline_mode = #tpu.pipeline_mode<synchronous>, transform_indices = @transform_1, window_bounds = array<i64: 16, 128>}, {pipeline_mode = #tpu.pipeline_mode<synchronous>, transform_indices = @transform_2, window_bounds = array<i64: 1, 128>}, {pipeline_mode = #tpu.pipeline_mode<synchronous>, transform_indices = @transform_3, window_bounds = array<i64: 128, 128>}, {pipeline_mode = #tpu.pipeline_mode<synchronous>, transform_indices = @transform_4, window_bounds = array<i64: 1, 128>}, {pipeline_mode = #tpu.pipeline_mode<synchronous>, transform_indices = @transform_5, window_bounds = array<i64: 128, 128>}, {pipeline_mode = #tpu.pipeline_mode<synchronous>, transform_indices = @transform_6, window_bounds = array<i64: 1, 128>}, {pipeline_mode = #tpu.pipeline_mode<synchronous>, transform_indices = @transform_7, window_bounds = array<i64: 128, 128>}, {pipeline_mode = #tpu.pipeline_mode<synchronous>, transform_indices = @transform_8, window_bounds = array<i64: 1, 128>}, {pipeline_mode = #tpu.pipeline_mode<synchronous>, transform_indices = @transform_9, window_bounds = array<i64: 128, 384>}, {pipeline_mode = #tpu.pipeline_mode<synchronous>, transform_indices = @transform_10, window_bounds = array<i64: 1, 384>}, {transform_indices = @transform_11, window_bounds = array<i64: 16, 384>}]} {
    %c0 = arith.constant 0 : index
    %c0_0 = arith.constant 0 : index
    %0 = vector.load %arg1[%c0, %c0_0] : memref<16x16xbf16, #tpu.memory_space<vmem>>, vector<16x16xbf16>
    %c0_1 = arith.constant 0 : index
    %c0_2 = arith.constant 0 : index
    %1 = vector.load %arg2[%c0_1, %c0_2] : memref<16x128xbf16, #tpu.memory_space<vmem>>, vector<16x128xbf16>
    %cst = arith.constant dense<0.000000e+00> : vector<16x128xf32>
    %2 = tpu.matmul %0, %1, %cst {dimension_numbers = #tpu.dot_dimension_numbers<[1], [0], [0], [1], [0, 0, 1, 1], [], []>} : vector<16x16xbf16>, vector<16x128xbf16>, vector<16x128xf32> -> vector<16x128xf32>
    %c0_3 = arith.constant 0 : index
    %c0_4 = arith.constant 0 : index
    %3 = vector.load %arg3[%c0_3, %c0_4] : memref<1x128xf32, #tpu.memory_space<vmem>>, vector<1x128xf32>
    %4 = vector.broadcast %3 : vector<1x128xf32> to vector<16x128xf32>
    %5 = arith.addf %2, %4 : vector<16x128xf32>
    %cst_5 = arith.constant 0.000000e+00 : f32
    %6 = vector.broadcast %cst_5 : f32 to vector<16x128xf32>
    %7 = arith.maximumf %5, %6 : vector<16x128xf32>
    %8 = arith.truncf %7 : vector<16x128xf32> to vector<16x128xbf16>
    %c0_6 = arith.constant 0 : index
    %c0_7 = arith.constant 0 : index
    %9 = vector.load %arg4[%c0_6, %c0_7] : memref<128x128xbf16, #tpu.memory_space<vmem>>, vector<128x128xbf16>
    %cst_8 = arith.constant dense<0.000000e+00> : vector<16x128xf32>
    %10 = tpu.matmul %8, %9, %cst_8 {dimension_numbers = #tpu.dot_dimension_numbers<[1], [0], [0], [1], [0, 0, 1, 1], [], []>} : vector<16x128xbf16>, vector<128x128xbf16>, vector<16x128xf32> -> vector<16x128xf32>
    %c0_9 = arith.constant 0 : index
    %c0_10 = arith.constant 0 : index
    %11 = vector.load %arg5[%c0_9, %c0_10] : memref<1x128xf32, #tpu.memory_space<vmem>>, vector<1x128xf32>
    %12 = vector.broadcast %11 : vector<1x128xf32> to vector<16x128xf32>
    %13 = arith.addf %10, %12 : vector<16x128xf32>
    %cst_11 = arith.constant 0.000000e+00 : f32
    %14 = vector.broadcast %cst_11 : f32 to vector<16x128xf32>
    %15 = arith.maximumf %13, %14 : vector<16x128xf32>
    %16 = arith.truncf %15 : vector<16x128xf32> to vector<16x128xbf16>
    %c0_12 = arith.constant 0 : index
    %c0_13 = arith.constant 0 : index
    %17 = vector.load %arg6[%c0_12, %c0_13] : memref<128x128xbf16, #tpu.memory_space<vmem>>, vector<128x128xbf16>
    %cst_14 = arith.constant dense<0.000000e+00> : vector<16x128xf32>
    %18 = tpu.matmul %16, %17, %cst_14 {dimension_numbers = #tpu.dot_dimension_numbers<[1], [0], [0], [1], [0, 0, 1, 1], [], []>} : vector<16x128xbf16>, vector<128x128xbf16>, vector<16x128xf32> -> vector<16x128xf32>
    %c0_15 = arith.constant 0 : index
    %c0_16 = arith.constant 0 : index
    %19 = vector.load %arg7[%c0_15, %c0_16] : memref<1x128xf32, #tpu.memory_space<vmem>>, vector<1x128xf32>
    %20 = vector.broadcast %19 : vector<1x128xf32> to vector<16x128xf32>
    %21 = arith.addf %18, %20 : vector<16x128xf32>
    %cst_17 = arith.constant 0.000000e+00 : f32
    %22 = vector.broadcast %cst_17 : f32 to vector<16x128xf32>
    %23 = arith.maximumf %21, %22 : vector<16x128xf32>
    %24 = arith.truncf %23 : vector<16x128xf32> to vector<16x128xbf16>
    %c0_18 = arith.constant 0 : index
    %c0_19 = arith.constant 0 : index
    %25 = vector.load %arg8[%c0_18, %c0_19] : memref<128x128xbf16, #tpu.memory_space<vmem>>, vector<128x128xbf16>
    %cst_20 = arith.constant dense<0.000000e+00> : vector<16x128xf32>
    %26 = tpu.matmul %24, %25, %cst_20 {dimension_numbers = #tpu.dot_dimension_numbers<[1], [0], [0], [1], [0, 0, 1, 1], [], []>} : vector<16x128xbf16>, vector<128x128xbf16>, vector<16x128xf32> -> vector<16x128xf32>
    %c0_21 = arith.constant 0 : index
    %c0_22 = arith.constant 0 : index
    %27 = vector.load %arg9[%c0_21, %c0_22] : memref<1x128xf32, #tpu.memory_space<vmem>>, vector<1x128xf32>
    %28 = vector.broadcast %27 : vector<1x128xf32> to vector<16x128xf32>
    %29 = arith.addf %26, %28 : vector<16x128xf32>
    %cst_23 = arith.constant 0.000000e+00 : f32
    %30 = vector.broadcast %cst_23 : f32 to vector<16x128xf32>
    %31 = arith.maximumf %29, %30 : vector<16x128xf32>
    %32 = arith.truncf %31 : vector<16x128xf32> to vector<16x128xbf16>
    %c0_24 = arith.constant 0 : index
    %c0_25 = arith.constant 0 : index
    %33 = vector.load %arg10[%c0_24, %c0_25] : memref<128x384xbf16, #tpu.memory_space<vmem>>, vector<128x384xbf16>
    %cst_26 = arith.constant dense<0.000000e+00> : vector<16x384xf32>
    %34 = tpu.matmul %32, %33, %cst_26 {dimension_numbers = #tpu.dot_dimension_numbers<[1], [0], [0], [1], [0, 0, 1, 1], [], []>} : vector<16x128xbf16>, vector<128x384xbf16>, vector<16x384xf32> -> vector<16x384xf32>
    %c0_27 = arith.constant 0 : index
    %c0_28 = arith.constant 0 : index
    %35 = vector.load %arg11[%c0_27, %c0_28] : memref<1x384xf32, #tpu.memory_space<vmem>>, vector<1x384xf32>
    %36 = vector.broadcast %35 : vector<1x384xf32> to vector<16x384xf32>
    %37 = arith.addf %34, %36 : vector<16x384xf32>
    %c0_29 = arith.constant 0 : index
    %c0_30 = arith.constant 0 : index
    %38 = vector.load %arg12[%c0_29, %c0_30] : memref<16x384xf32, #tpu.memory_space<vmem>>, vector<16x384xf32>
    tpu.vector_store %arg12[%c0_29, %c0_30], %37 {strides = array<i32>} : memref<16x384xf32, #tpu.memory_space<vmem>>, vector<16x384xf32>,
    return
  }
  func.func @transform_0(%arg0: i32) -> (i32, i32) {
    %c0_i32 = arith.constant 0 : i32
    %c0_i32_0 = arith.constant 0 : i32
    return %arg0, %c0_i32 : i32, i32
  }
  func.func @transform_1(%arg0: i32) -> (i32, i32) {
    %c0_i32 = arith.constant 0 : i32
    %c0_i32_0 = arith.constant 0 : i32
    %c0_i32_1 = arith.constant 0 : i32
    return %c0_i32, %c0_i32_0 : i32, i32
  }
  func.func @transform_2(%arg0: i32) -> (i32, i32) {
    %c0_i32 = arith.constant 0 : i32
    %c0_i32_0 = arith.constant 0 : i32
    %c0_i32_1 = arith.constant 0 : i32
    return %c0_i32, %c0_i32_0 : i32, i32
  }
  func.func @transform_3(%arg0: i32) -> (i32, i32) {
    %c0_i32 = arith.constant 0 : i32
    %c0_i32_0 = arith.constant 0 : i32
    %c0_i32_1 = arith.constant 0 : i32
    return %c0_i32, %c0_i32_0 : i32, i32
  }
  func.func @transform_4(%arg0: i32) -> (i32, i32) {
    %c0_i32 = arith.constant 0 : i32
    %c0_i32_0 = arith.constant 0 : i32
    %c0_i32_1 = arith.constant 0 : i32
    return %c0_i32, %c0_i32_0 : i32, i32
  }
  func.func @transform_5(%arg0: i32) -> (i32, i32) {
    %c0_i32 = arith.constant 0 : i32
    %c0_i32_0 = arith.constant 0 : i32
    %c0_i32_1 = arith.constant 0 : i32
    return %c0_i32, %c0_i32_0 : i32, i32
  }
  func.func @transform_6(%arg0: i32) -> (i32, i32) {
    %c0_i32 = arith.constant 0 : i32
    %c0_i32_0 = arith.constant 0 : i32
    %c0_i32_1 = arith.constant 0 : i32
    return %c0_i32, %c0_i32_0 : i32, i32
  }
  func.func @transform_7(%arg0: i32) -> (i32, i32) {
    %c0_i32 = arith.constant 0 : i32
    %c0_i32_0 = arith.constant 0 : i32
    %c0_i32_1 = arith.constant 0 : i32
    return %c0_i32, %c0_i32_0 : i32, i32
  }
  func.func @transform_8(%arg0: i32) -> (i32, i32) {
    %c0_i32 = arith.constant 0 : i32
    %c0_i32_0 = arith.constant 0 : i32
    %c0_i32_1 = arith.constant 0 : i32
    return %c0_i32, %c0_i32_0 : i32, i32
  }
  func.func @transform_9(%arg0: i32) -> (i32, i32) {
    %c0_i32 = arith.constant 0 : i32
    %c0_i32_0 = arith.constant 0 : i32
    %c0_i32_1 = arith.constant 0 : i32
    return %c0_i32, %c0_i32_0 : i32, i32
  }
  func.func @transform_10(%arg0: i32) -> (i32, i32) {
    %c0_i32 = arith.constant 0 : i32
    %c0_i32_0 = arith.constant 0 : i32
    %c0_i32_1 = arith.constant 0 : i32
    return %c0_i32, %c0_i32_0 : i32, i32
  }
  func.func @transform_11(%arg0: i32) -> (i32, i32) {
    %c0_i32 = arith.constant 0 : i32
    %c0_i32_0 = arith.constant 0 : i32
    return %arg0, %c0_i32 : i32, i32
  }
}

</mosaic_0001>

<llo_original>
// kernel: tpu_custom_call.1
$region0: #{tpu_custom_call.1}
  #allocation0 [shape = 'u32[]', space=smem, size = 0x4, offset = 0x4, fixed_abs, tag = 'smem constant byte address 0x4 - core index']
  #allocation1 [shape = 'u32[72,128]{1,0:T(1,128)}', space=vmem, size = 0x9000, scoped, tag = 'internal scratch']
  %s0 = inlined_call_operand.hbm [shape: bf16[16,16], index: 0, kind: input, shape index: {}]
  %s1 = inlined_call_operand.hbm [shape: bf16[16,128], index: 1, kind: input, shape index: {}]
  %s2 = inlined_call_operand.vmem [shape: f32[1,128], index: 2, kind: input, shape index: {}]
  %s3 = inlined_call_operand.hbm [shape: bf16[128,128], index: 3, kind: input, shape index: {}]
  %s4 = inlined_call_operand.vmem [shape: f32[1,128], index: 4, kind: input, shape index: {}]
  %s5 = inlined_call_operand.hbm [shape: bf16[128,128], index: 5, kind: input, shape index: {}]
  %s6 = inlined_call_operand.hbm [shape: f32[1,128], index: 6, kind: input, shape index: {}]
  %s7 = inlined_call_operand.hbm [shape: bf16[128,128], index: 7, kind: input, shape index: {}]
  %s8 = inlined_call_operand.vmem [shape: f32[1,128], index: 8, kind: input, shape index: {}]
  %s9 = inlined_call_operand.hbm [shape: bf16[128,384], index: 9, kind: input, shape index: {}]
  %s10 = inlined_call_operand.vmem [shape: f32[1,384], index: 10, kind: input, shape index: {}]
  %s11 = inlined_call_operand.hbm [shape: f32[16,384], index: 11, kind: output, shape index: {}]
  %s12 = sld [smem:[#allocation0]]
  $region82: #{tpu_custom_call.1} parent=0
    _
  %s14 = ssub.s32 1, %s12
  %s15 = scalar_select 0, %s14, %s12
  $region1: #{tpu_custom_call.1} parent=0
    #allocation2 [shape = 'u8[4096]{0}', space=vmem, size = 0x1000, scoped, tag = 'input window, operand 0, single buffered']
    #allocation3 [shape = 's32[1]{0}', space=sflag, size = 0x4, scoped, tag = 'scoped memory for tpu_custom_call.1']
    #allocation4 [shape = 's32[1]{0}', space=sflag, size = 0x4, scoped, tag = 'scoped memory for tpu_custom_call.1']
    #allocation5 [shape = 'u8[4096]{0}', space=vmem, size = 0x1000, scoped, tag = 'input window, operand 1, single buffered']
    #allocation6 [shape = 's32[1]{0}', space=sflag, size = 0x4, scoped, tag = 'scoped memory for tpu_custom_call.1']
    #allocation7 [shape = 'u8[32768]{0}', space=vmem, size = 0x8000, scoped, tag = 'input window, operand 3, single buffered']
    #allocation8 [shape = 'u8[32768]{0}', space=vmem, size = 0x8000, scoped, tag = 'input window, operand 5, single buffered']
    #allocation9 [shape = 's32[1]{0}', space=sflag, size = 0x4, scoped, tag = 'scoped memory for tpu_custom_call.1']
    #allocation10 [shape = 'u8[512]{0}', space=vmem, size = 0x400, scoped, tag = 'input window, operand 6, single buffered']
    #allocation11 [shape = 'u8[32768]{0}', space=vmem, size = 0x8000, scoped, tag = 'input window, operand 7, single buffered']
    #allocation12 [shape = 's32[1]{0}', space=sflag, size = 0x4, scoped, tag = 'scoped memory for tpu_custom_call.1']
    #allocation13 [shape = 'u8[98304]{0}', space=vmem, size = 0x18000, scoped, tag = 'input window, operand 9, single buffered']
    #allocation14 [shape = 'u8[24576]{0}', space=vmem, size = 0x6000, scoped, tag = 'output window, operand 0, single buffered']
    %16 = vsyncpa [#allocation3], 0
    %17 = vsyncpa [#allocation6], 0
    %18 = vsyncpa [#allocation9], 0
    %19 = vsyncpa [#allocation12], 0
    %20 = vsyncpa [#allocation4], 0
    // Predicated region
    $region2: #{tpu_custom_call.1} parent=1 // pred_check
      _
    $region3: #{tpu_custom_call.1} parent=1 // pred_check_branch
      %22 = sbr.rel (0) target = $region5
    $region4: #{tpu_custom_call.1} parent=1 // pred_region
      %24 = vsyncadd [#allocation3], 0
      %s25 = sshll.u32 %s0, 4
      %s26 = int_to_ptr.hbm [resolvable:$true] %s25
      %s27 = sshll.u32 [#allocation2], 4
      %s28 = int_to_ptr.vmem [resolvable:$true] %s27
      %33 = dma.hbm_to_vmem [thread:$0]  %s26, 128, %s28, [#allocation3], 64, 64, 4
    $region5: #{tpu_custom_call.1} parent=1 // pred_fallthru
      _
    // Predicated region
    $region6: #{tpu_custom_call.1} parent=1 // pred_check
      _
    $region7: #{tpu_custom_call.1} parent=1 // pred_check_branch
      %35 = sbr.rel (0) target = $region9
    $region8: #{tpu_custom_call.1} parent=1 // pred_region
      %37 = vsyncadd [#allocation6], 0
      %s38 = sshll.u32 %s1, 4
      %s39 = int_to_ptr.hbm [resolvable:$true] %s38
      %s40 = sshll.u32 [#allocation5], 4
      %s41 = int_to_ptr.vmem [resolvable:$true] %s40
      %46 = dma.hbm_to_vmem [thread:$0]  %s39, 128, %s41, [#allocation6], 64, 64, 4
    $region9: #{tpu_custom_call.1} parent=1 // pred_fallthru
      _
    // Predicated region
    $region10: #{tpu_custom_call.1} parent=1 // pred_check
      _
    $region11: #{tpu_custom_call.1} parent=1 // pred_check_branch
      %48 = sbr.rel (0) target = $region13
    $region12: #{tpu_custom_call.1} parent=1 // pred_region
      _
    $region13: #{tpu_custom_call.1} parent=1 // pred_fallthru
      _
    // Predicated region
    $region14: #{tpu_custom_call.1} parent=1 // pred_check
      _
    $region15: #{tpu_custom_call.1} parent=1 // pred_check_branch
      %50 = sbr.rel (0) target = $region17
    $region16: #{tpu_custom_call.1} parent=1 // pred_region
      %52 = vsyncadd [#allocation6], 0
      %s53 = sshll.u32 %s3, 4
      %s54 = int_to_ptr.hbm [resolvable:$true] %s53
      %s55 = sshll.u32 [#allocation7], 4
      %s56 = int_to_ptr.vmem [resolvable:$true] %s55
      %61 = dma.hbm_to_vmem [thread:$0]  %s54, 1024, %s56, [#allocation6], 64, 64, 4
    $region17: #{tpu_custom_call.1} parent=1 // pred_fallthru
      _
    // Predicated region
    $region18: #{tpu_custom_call.1} parent=1 // pred_check
      _
    $region19: #{tpu_custom_call.1} parent=1 // pred_check_branch
      %63 = sbr.rel (0) target = $region21
    $region20: #{tpu_custom_call.1} parent=1 // pred_region
      _
    $region21: #{tpu_custom_call.1} parent=1 // pred_fallthru
      _
    // Predicated region
    $region22: #{tpu_custom_call.1} parent=1 // pred_check
      _
    $region23: #{tpu_custom_call.1} parent=1 // pred_check_branch
      %65 = sbr.rel (0) target = $region25
    $region24: #{tpu_custom_call.1} parent=1 // pred_region
      %67 = vsyncadd [#allocation9], 0
      %s68 = sshll.u32 %s5, 4
      %s69 = int_to_ptr.hbm [resolvable:$true] %s68
      %s70 = sshll.u32 [#allocation8], 4
      %s71 = int_to_ptr.vmem [resolvable:$true] %s70
      %76 = dma.hbm_to_vmem [thread:$0]  %s69, 1024, %s71, [#allocation9], 64, 64, 4
    $region25: #{tpu_custom_call.1} parent=1 // pred_fallthru
      _
    // Predicated region
    $region26: #{tpu_custom_call.1} parent=1 // pred_check
      _
    $region27: #{tpu_custom_call.1} parent=1 // pred_check_branch
      %78 = sbr.rel (0) target = $region29
    $region28: #{tpu_custom_call.1} parent=1 // pred_region
      %80 = vsyncadd [#allocation9], 0
      %s82 = sshll.u32 %s6, 4
      %s83 = int_to_ptr.hbm [resolvable:$true] %s82
      %s84 = sshll.u32 [#allocation10], 4
      %s85 = int_to_ptr.vmem [resolvable:$true] %s84
      %87 = dma.hbm_to_vmem [thread:$0]  %s83, 16, %s85, [#allocation9]
    $region29: #{tpu_custom_call.1} parent=1 // pred_fallthru
      _
    // Predicated region
    $region30: #{tpu_custom_call.1} parent=1 // pred_check
      _
    $region31: #{tpu_custom_call.1} parent=1 // pred_check_branch
      %89 = sbr.rel (0) target = $region33
    $region32: #{tpu_custom_call.1} parent=1 // pred_region
      %91 = vsyncadd [#allocation12], 0
      %s92 = sshll.u32 %s7, 4
      %s93 = int_to_ptr.hbm [resolvable:$true] %s92
      %s94 = sshll.u32 [#allocation11], 4
      %s95 = int_to_ptr.vmem [resolvable:$true] %s94
      %100 = dma.hbm_to_vmem [thread:$0]  %s93, 1024, %s95, [#allocation12], 64, 64, 4
    $region33: #{tpu_custom_call.1} parent=1 // pred_fallthru
      _
    // Predicated region
    $region34: #{tpu_custom_call.1} parent=1 // pred_check
      _
    $region35: #{tpu_custom_call.1} parent=1 // pred_check_branch
      %102 = sbr.rel (0) target = $region37
    $region36: #{tpu_custom_call.1} parent=1 // pred_region
      _
    $region37: #{tpu_custom_call.1} parent=1 // pred_fallthru
      _
    // Predicated region
    $region38: #{tpu_custom_call.1} parent=1 // pred_check
      _
    $region39: #{tpu_custom_call.1} parent=1 // pred_check_branch
      %104 = sbr.rel (0) target = $region41
    $region40: #{tpu_custom_call.1} parent=1 // pred_region
      %106 = vsyncadd [#allocation12], 0
      %s107 = sshll.u32 %s9, 4
      %s108 = int_to_ptr.hbm [resolvable:$true] %s107
      %s109 = sshll.u32 [#allocation13], 4
      %s110 = int_to_ptr.vmem [resolvable:$true] %s109
      %115 = dma.hbm_to_vmem [thread:$0]  %s108, 3072, %s110, [#allocation12], 192, 192, 12
    $region41: #{tpu_custom_call.1} parent=1 // pred_fallthru
      _
    // Predicated region
    $region42: #{tpu_custom_call.1} parent=1 // pred_check
      _
    $region43: #{tpu_custom_call.1} parent=1 // pred_check_branch
      %117 = sbr.rel (0) target = $region45
    $region44: #{tpu_custom_call.1} parent=1 // pred_region
      _
    $region45: #{tpu_custom_call.1} parent=1 // pred_fallthru
      _
    // Predicated region
    $region46: #{tpu_custom_call.1} parent=1 // pred_check
      _
    $region47: #{tpu_custom_call.1} parent=1 // pred_check_branch
      %119 = sbr.rel (0) target = $region49
    $region48: #{tpu_custom_call.1} parent=1 // pred_region
      %121 = dma.done [#allocation3], 128
    $region49: #{tpu_custom_call.1} parent=1 // pred_fallthru
      _
    // Predicated region
    $region50: #{tpu_custom_call.1} parent=1 // pred_check
      _
    $region51: #{tpu_custom_call.1} parent=1 // pred_check_branch
      %123 = sbr.rel (0) target = $region53
    $region52: #{tpu_custom_call.1} parent=1 // pred_region
      %125 = dma.done [#allocation6], 128
    $region53: #{tpu_custom_call.1} parent=1 // pred_fallthru
      _
    // Predicated region
    $region54: #{tpu_custom_call.1} parent=1 // pred_check
      _
    $region55: #{tpu_custom_call.1} parent=1 // pred_check_branch
      %127 = sbr.rel (0) target = $region57
    $region56: #{tpu_custom_call.1} parent=1 // pred_region
      %129 = dma.done [#allocation6], 1024
    $region57: #{tpu_custom_call.1} parent=1 // pred_fallthru
      _
    // Predicated region
    $region58: #{tpu_custom_call.1} parent=1 // pred_check
      _
    $region59: #{tpu_custom_call.1} parent=1 // pred_check_branch
      %131 = sbr.rel (0) target = $region61
    $region60: #{tpu_custom_call.1} parent=1 // pred_region
      %133 = dma.done [#allocation9], 1024
    $region61: #{tpu_custom_call.1} parent=1 // pred_fallthru
      _
    // Predicated region
    $region62: #{tpu_custom_call.1} parent=1 // pred_check
      _
    $region63: #{tpu_custom_call.1} parent=1 // pred_check_branch
      %135 = sbr.rel (0) target = $region65
    $region64: #{tpu_custom_call.1} parent=1 // pred_region
      %137 = dma.done [#allocation9], 16
    $region65: #{tpu_custom_call.1} parent=1 // pred_fallthru
      _
    // Predicated region
    $region66: #{tpu_custom_call.1} parent=1 // pred_check
      _
    $region67: #{tpu_custom_call.1} parent=1 // pred_check_branch
      %139 = sbr.rel (0) target = $region69
    $region68: #{tpu_custom_call.1} parent=1 // pred_region
      %141 = dma.done [#allocation12], 1024
    $region69: #{tpu_custom_call.1} parent=1 // pred_fallthru
      _
    // Predicated region
    $region70: #{tpu_custom_call.1} parent=1 // pred_check
      _
    $region71: #{tpu_custom_call.1} parent=1 // pred_check_branch
      %143 = sbr.rel (0) target = $region73
    $region72: #{tpu_custom_call.1} parent=1 // pred_region
      %145 = dma.done [#allocation12], 3072
    $region73: #{tpu_custom_call.1} parent=1 // pred_fallthru
      _
    %v147 = vld [vmem:[#allocation2] sm:$0xf]
    %v148 = vld [vmem:[#allocation2 + $0x4] sm:$0xf]
    %v149 = vld [vmem:[#allocation5] sm:$0xf]
    %v150 = vld [vmem:[#allocation5 + $0x4] sm:$0xf]
    %v151 = vld [vmem:[%s2] sm:$0x1]
    %v153 = vperm.slane %v151, 0
    %v157 = vunpack.c.l.b16 %v147
    %v158 = vunpack.c.l.b16 %v148
    %v159 = vpack.c.b16 %v158, %v157
    %v162 = vunpack.c.l.b16 %v149
    %v163 = vunpack.c.l.b16 %v150
    %v164 = vpack.c.b16 %v163, %v162
    %vm166 = vcmask 130048
    %v168 = vsel %vm166, %v159, 0
    %170 = vmatpush.bf16.msra.mxu0 0
    %171 = vmatpush.bf16.msra.mxu0 0
    %172 = vmatpush.bf16.msra.mxu0 0
    %173 = vmatpush.bf16.msra.mxu0 0
    %174 = vmatpush.bf16.msra.mxu0 0
    %175 = vmatpush.bf16.msra.mxu0 0
    %176 = vmatpush.bf16.msra.mxu0 0
    %177 = vmatpush.bf16.msra.mxu0 %v164
    %178 = vmatmul.bf16.gmra.mxu0 %v168
    %v179 = vpop.f32.mrf.mxu0
    %v180 = vadd.f32 %v153, %v179
    %v181 = vpop.f32.mrf.mxu0
    %v182 = vadd.f32 %v153, %v181
    %183 = vdwg.mxu0
    %v184 = vmax.f32 %v180, 0.0
    %v185 = vmax.f32 %v182, 0.0
    %v186 = vpack.c.bf16 %v185, %v184
    %v187 = vld [vmem:[#allocation7] sm:$0xf]
    %v188 = vld [vmem:[#allocation7 + $0x4] sm:$0xf]
    %v189 = vld [vmem:[#allocation7 + $0x8] sm:$0xf]
    %v190 = vld [vmem:[#allocation7 + $0xc] sm:$0xf]
    %v191 = vld [vmem:[#allocation7 + $0x10] sm:$0xf]
    %v192 = vld [vmem:[#allocation7 + $0x14] sm:$0xf]
    %v193 = vld [vmem:[#allocation7 + $0x18] sm:$0xf]
    %v194 = vld [vmem:[#allocation7 + $0x1c] sm:$0xf]
    %v195 = vld [vmem:[#allocation7 + $0x20] sm:$0xf]
    %v196 = vld [vmem:[#allocation7 + $0x24] sm:$0xf]
    %v197 = vld [vmem:[#allocation7 + $0x28] sm:$0xf]
    %v198 = vld [vmem:[#allocation7 + $0x2c] sm:$0xf]
    %v199 = vld [vmem:[#allocation7 + $0x30] sm:$0xf]
    %v200 = vld [vmem:[#allocation7 + $0x34] sm:$0xf]
    %v201 = vld [vmem:[#allocation7 + $0x38] sm:$0xf]
    %v202 = vld [vmem:[#allocation7 + $0x3c] sm:$0xf]
    %v203 = vld [vmem:[%s4] sm:$0x1]
    %v205 = vperm.slane %v203, 0
    %v223 = vunpack.c.l.b16 %v187
    %v224 = vunpack.c.l.b16 %v188
    %v225 = vunpack.c.l.b16 %v189
    %v226 = vunpack.c.l.b16 %v190
    %v227 = vunpack.c.l.b16 %v191
    %v228 = vunpack.c.l.b16 %v192
    %v229 = vunpack.c.l.b16 %v193
    %v230 = vunpack.c.l.b16 %v194
    %v231 = vunpack.c.l.b16 %v195
    %v232 = vunpack.c.l.b16 %v196
    %v233 = vunpack.c.l.b16 %v197
    %v234 = vunpack.c.l.b16 %v198
    %v235 = vunpack.c.l.b16 %v199
    %v236 = vunpack.c.l.b16 %v200
    %v237 = vunpack.c.l.b16 %v201
    %v238 = vunpack.c.l.b16 %v202
    %v239 = vpack.c.b16 %v224, %v223
    %v240 = vpack.c.b16 %v226, %v225
    %v241 = vpack.c.b16 %v228, %v227
    %v242 = vpack.c.b16 %v230, %v229
    %v243 = vpack.c.b16 %v232, %v231
    %v244 = vpack.c.b16 %v234, %v233
    %v245 = vpack.c.b16 %v236, %v235
    %v246 = vpack.c.b16 %v238, %v237
    %255 = vmatpush.bf16.msra.mxu0 %v246
    %256 = vmatpush.bf16.msra.mxu0 %v245
    %257 = vmatpush.bf16.msra.mxu0 %v244
    %258 = vmatpush.bf16.msra.mxu0 %v243
    %259 = vmatpush.bf16.msra.mxu0 %v242
    %260 = vmatpush.bf16.msra.mxu0 %v241
    %261 = vmatpush.bf16.msra.mxu0 %v240
    %262 = vmatpush.bf16.msra.mxu0 %v239
    %263 = vmatmul.bf16.gmra.mxu0 %v186
    %v264 = vpop.f32.mrf.mxu0
    %v265 = vadd.f32 %v205, %v264
    %v266 = vpop.f32.mrf.mxu0
    %v267 = vadd.f32 %v205, %v266
    %268 = vdwg.mxu0
    %v269 = vmax.f32 %v265, 0.0
    %v270 = vmax.f32 %v267, 0.0
    %v271 = vpack.c.bf16 %v270, %v269
    %v272 = vld [vmem:[#allocation8] sm:$0xf]
    %v273 = vld [vmem:[#allocation8 + $0x4] sm:$0xf]
    %v274 = vld [vmem:[#allocation8 + $0x8] sm:$0xf]
    %v275 = vld [vmem:[#allocation8 + $0xc] sm:$0xf]
    %v276 = vld [vmem:[#allocation8 + $0x10] sm:$0xf]
    %v277 = vld [vmem:[#allocation8 + $0x14] sm:$0xf]
    %v278 = vld [vmem:[#allocation8 + $0x18] sm:$0xf]
    %v279 = vld [vmem:[#allocation8 + $0x1c] sm:$0xf]
    %v280 = vld [vmem:[#allocation8 + $0x20] sm:$0xf]
    %v281 = vld [vmem:[#allocation8 + $0x24] sm:$0xf]
    %v282 = vld [vmem:[#allocation8 + $0x28] sm:$0xf]
    %v283 = vld [vmem:[#allocation8 + $0x2c] sm:$0xf]
    %v284 = vld [vmem:[#allocation8 + $0x30] sm:$0xf]
    %v285 = vld [vmem:[#allocation8 + $0x34] sm:$0xf]
    %v286 = vld [vmem:[#allocation8 + $0x38] sm:$0xf]
    %v287 = vld [vmem:[#allocation8 + $0x3c] sm:$0xf]
    %v288 = vld [vmem:[#allocation10] sm:$0x1]
    %v290 = vperm.slane %v288, 0
    %v308 = vunpack.c.l.b16 %v272
    %v309 = vunpack.c.l.b16 %v273
    %v310 = vunpack.c.l.b16 %v274
    %v311 = vunpack.c.l.b16 %v275
    %v312 = vunpack.c.l.b16 %v276
    %v313 = vunpack.c.l.b16 %v277
    %v314 = vunpack.c.l.b16 %v278
    %v315 = vunpack.c.l.b16 %v279
    %v316 = vunpack.c.l.b16 %v280
    %v317 = vunpack.c.l.b16 %v281
    %v318 = vunpack.c.l.b16 %v282
    %v319 = vunpack.c.l.b16 %v283
    %v320 = vunpack.c.l.b16 %v284
    %v321 = vunpack.c.l.b16 %v285
    %v322 = vunpack.c.l.b16 %v286
    %v323 = vunpack.c.l.b16 %v287
    %v324 = vpack.c.b16 %v309, %v308
    %v325 = vpack.c.b16 %v311, %v310
    %v326 = vpack.c.b16 %v313, %v312
    %v327 = vpack.c.b16 %v315, %v314
    %v328 = vpack.c.b16 %v317, %v316
    %v329 = vpack.c.b16 %v319, %v318
    %v330 = vpack.c.b16 %v321, %v320
    %v331 = vpack.c.b16 %v323, %v322
    %340 = vmatpush.bf16.msra.mxu0 %v331
    %341 = vmatpush.bf16.msra.mxu0 %v330
    %342 = vmatpush.bf16.msra.mxu0 %v329
    %343 = vmatpush.bf16.msra.mxu0 %v328
    %344 = vmatpush.bf16.msra.mxu0 %v327
    %345 = vmatpush.bf16.msra.mxu0 %v326
    %346 = vmatpush.bf16.msra.mxu0 %v325
    %347 = vmatpush.bf16.msra.mxu0 %v324
    %348 = vmatmul.bf16.gmra.mxu0 %v271
    %v349 = vpop.f32.mrf.mxu0
    %v350 = vadd.f32 %v290, %v349
    %v351 = vpop.f32.mrf.mxu0
    %v352 = vadd.f32 %v290, %v351
    %353 = vdwg.mxu0
    %v354 = vmax.f32 %v350, 0.0
    %v355 = vmax.f32 %v352, 0.0
    %v356 = vpack.c.bf16 %v355, %v354
    %v357 = vld [vmem:[#allocation11] sm:$0xf]
    %v358 = vld [vmem:[#allocation11 + $0x4] sm:$0xf]
    %v359 = vld [vmem:[#allocation11 + $0x8] sm:$0xf]
    %v360 = vld [vmem:[#allocation11 + $0xc] sm:$0xf]
    %v361 = vld [vmem:[#allocation11 + $0x10] sm:$0xf]
    %v362 = vld [vmem:[#allocation11 + $0x14] sm:$0xf]
    %v363 = vld [vmem:[#allocation11 + $0x18] sm:$0xf]
    %v364 = vld [vmem:[#allocation11 + $0x1c] sm:$0xf]
    %v365 = vld [vmem:[#allocation11 + $0x20] sm:$0xf]
    %v366 = vld [vmem:[#allocation11 + $0x24] sm:$0xf]
    %v367 = vld [vmem:[#allocation11 + $0x28] sm:$0xf]
    %v368 = vld [vmem:[#allocation11 + $0x2c] sm:$0xf]
    %v369 = vld [vmem:[#allocation11 + $0x30] sm:$0xf]
    %v370 = vld [vmem:[#allocation11 + $0x34] sm:$0xf]
    %v371 = vld [vmem:[#allocation11 + $0x38] sm:$0xf]
    %v372 = vld [vmem:[#allocation11 + $0x3c] sm:$0xf]
    %v373 = vld [vmem:[%s8] sm:$0x1]
    %v375 = vperm.slane %v373, 0
    %v393 = vunpack.c.l.b16 %v357
    %v394 = vunpack.c.l.b16 %v358
    %v395 = vunpack.c.l.b16 %v359
    %v396 = vunpack.c.l.b16 %v360
    %v397 = vunpack.c.l.b16 %v361
    %v398 = vunpack.c.l.b16 %v362
    %v399 = vunpack.c.l.b16 %v363
    %v400 = vunpack.c.l.b16 %v364
    %v401 = vunpack.c.l.b16 %v365
    %v402 = vunpack.c.l.b16 %v366
    %v403 = vunpack.c.l.b16 %v367
    %v404 = vunpack.c.l.b16 %v368
    %v405 = vunpack.c.l.b16 %v369
    %v406 = vunpack.c.l.b16 %v370
    %v407 = vunpack.c.l.b16 %v371
    %v408 = vunpack.c.l.b16 %v372
    %v409 = vpack.c.b16 %v394, %v393
    %v410 = vpack.c.b16 %v396, %v395
    %v411 = vpack.c.b16 %v398, %v397
    %v412 = vpack.c.b16 %v400, %v399
    %v413 = vpack.c.b16 %v402, %v401
    %v414 = vpack.c.b16 %v404, %v403
    %v415 = vpack.c.b16 %v406, %v405
    %v416 = vpack.c.b16 %v408, %v407
    %425 = vmatpush.bf16.msra.mxu0 %v416
    %426 = vmatpush.bf16.msra.mxu0 %v415
    %427 = vmatpush.bf16.msra.mxu0 %v414
    %428 = vmatpush.bf16.msra.mxu0 %v413
    %429 = vmatpush.bf16.msra.mxu0 %v412
    %430 = vmatpush.bf16.msra.mxu0 %v411
    %431 = vmatpush.bf16.msra.mxu0 %v410
    %432 = vmatpush.bf16.msra.mxu0 %v409
    %433 = vmatmul.bf16.gmra.mxu0 %v356
    %v434 = vpop.f32.mrf.mxu0
    %v435 = vadd.f32 %v375, %v434
    %v436 = vpop.f32.mrf.mxu0
    %v437 = vadd.f32 %v375, %v436
    %438 = vdwg.mxu0
    %v439 = vmax.f32 %v435, 0.0
    %v440 = vmax.f32 %v437, 0.0
    %v441 = vpack.c.bf16 %v440, %v439
    %v442 = vld [vmem:[#allocation13] sm:$0xff]
    %v443 = vld [vmem:[#allocation13 + $0x8] sm:$0xf]
    %v444 = vld [vmem:[#allocation13 + $0xc] sm:$0xff]
    %v445 = vld [vmem:[#allocation13 + $0x14] sm:$0xf]
    %v446 = vld [vmem:[#allocation13 + $0x18] sm:$0xff]
    %v447 = vld [vmem:[#allocation13 + $0x20] sm:$0xf]
    %v448 = vld [vmem:[#allocation13 + $0x24] sm:$0xff]
    %v449 = vld [vmem:[#allocation13 + $0x2c] sm:$0xf]
    %v450 = vld [vmem:[#allocation13 + $0x30] sm:$0xff]
    %v451 = vld [vmem:[#allocation13 + $0x38] sm:$0xf]
    %v452 = vld [vmem:[#allocation13 + $0x3c] sm:$0xff]
    %v453 = vld [vmem:[#allocation13 + $0x44] sm:$0xf]
    %v454 = vld [vmem:[#allocation13 + $0x48] sm:$0xff]
    %v455 = vld [vmem:[#allocation13 + $0x50] sm:$0xf]
    %v456 = vld [vmem:[#allocation13 + $0x54] sm:$0xff]
    %v457 = vld [vmem:[#allocation13 + $0x5c] sm:$0xf]
    %v458 = vld [vmem:[#allocation13 + $0x60] sm:$0xff]
    %v459 = vld [vmem:[#allocation13 + $0x68] sm:$0xf]
    %v460 = vld [vmem:[#allocation13 + $0x6c] sm:$0xff]
    %v461 = vld [vmem:[#allocation13 + $0x74] sm:$0xf]
    %v462 = vld [vmem:[#allocation13 + $0x78] sm:$0xff]
    %v463 = vld [vmem:[#allocation13 + $0x80] sm:$0xf]
    %v464 = vld [vmem:[#allocation13 + $0x84] sm:$0xff]
    %v465 = vld [vmem:[#allocation13 + $0x8c] sm:$0xf]
    %v466 = vld [vmem:[#allocation13 + $0x90] sm:$0xff]
    %v467 = vld [vmem:[#allocation13 + $0x98] sm:$0xf]
    %v468 = vld [vmem:[#allocation13 + $0x9c] sm:$0xff]
    %v469 = vld [vmem:[#allocation13 + $0xa4] sm:$0xf]
    %v470 = vld [vmem:[#allocation13 + $0xa8] sm:$0xff]
    %v471 = vld [vmem:[#allocation13 + $0xb0] sm:$0xf]
    %v472 = vld [vmem:[#allocation13 + $0xb4] sm:$0xff]
    %v473 = vld [vmem:[#allocation13 + $0xbc] sm:$0xf]
    %v474 = vld [vmem:[%s10] sm:$0x7]
    %v476 = vperm.slane %v474, 0
    %v477 = vperm.slane %v474, 1
    %v478 = vperm.slane %v474, 2
    %v514 = vunpack.c.l.b16 %v442
    %v515 = vunpack.c.h.b16 %v442
    %v516 = vunpack.c.l.b16 %v443
    %v517 = vunpack.c.l.b16 %v444
    %v518 = vunpack.c.h.b16 %v444
    %v519 = vunpack.c.l.b16 %v445
    %v520 = vunpack.c.l.b16 %v446
    %v521 = vunpack.c.h.b16 %v446
    %v522 = vunpack.c.l.b16 %v447
    %v523 = vunpack.c.l.b16 %v448
    %v524 = vunpack.c.h.b16 %v448
    %v525 = vunpack.c.l.b16 %v449
    %v526 = vunpack.c.l.b16 %v450
    %v527 = vunpack.c.h.b16 %v450
    %v528 = vunpack.c.l.b16 %v451
    %v529 = vunpack.c.l.b16 %v452
    %v530 = vunpack.c.h.b16 %v452
    %v531 = vunpack.c.l.b16 %v453
    %v532 = vunpack.c.l.b16 %v454
    %v533 = vunpack.c.h.b16 %v454
    %v534 = vunpack.c.l.b16 %v455
    %v535 = vunpack.c.l.b16 %v456
    %v536 = vunpack.c.h.b16 %v456
    %v537 = vunpack.c.l.b16 %v457
    %v538 = vunpack.c.l.b16 %v458
    %v539 = vunpack.c.h.b16 %v458
    %v540 = vunpack.c.l.b16 %v459
    %v541 = vunpack.c.l.b16 %v460
    %v542 = vunpack.c.h.b16 %v460
    %v543 = vunpack.c.l.b16 %v461
    %v544 = vunpack.c.l.b16 %v462
    %v545 = vunpack.c.h.b16 %v462
    %v546 = vunpack.c.l.b16 %v463
    %v547 = vunpack.c.l.b16 %v464
    %v548 = vunpack.c.h.b16 %v464
    %v549 = vunpack.c.l.b16 %v465
    %v550 = vunpack.c.l.b16 %v466
    %v551 = vunpack.c.h.b16 %v466
    %v552 = vunpack.c.l.b16 %v467
    %v553 = vunpack.c.l.b16 %v468
    %v554 = vunpack.c.h.b16 %v468
    %v555 = vunpack.c.l.b16 %v469
    %v556 = vunpack.c.l.b16 %v470
    %v557 = vunpack.c.h.b16 %v470
    %v558 = vunpack.c.l.b16 %v471
    %v559 = vunpack.c.l.b16 %v472
    %v560 = vunpack.c.h.b16 %v472
    %v561 = vunpack.c.l.b16 %v473
    %v562 = vpack.c.b16 %v517, %v514
    %v563 = vpack.c.b16 %v518, %v515
    %v564 = vpack.c.b16 %v519, %v516
    %v565 = vpack.c.b16 %v523, %v520
    %v566 = vpack.c.b16 %v524, %v521
    %v567 = vpack.c.b16 %v525, %v522
    %v568 = vpack.c.b16 %v529, %v526
    %v569 = vpack.c.b16 %v530, %v527
    %v570 = vpack.c.b16 %v531, %v528
    %v571 = vpack.c.b16 %v535, %v532
    %v572 = vpack.c.b16 %v536, %v533
    %v573 = vpack.c.b16 %v537, %v534
    %v574 = vpack.c.b16 %v541, %v538
    %v575 = vpack.c.b16 %v542, %v539
    %v576 = vpack.c.b16 %v543, %v540
    %v577 = vpack.c.b16 %v547, %v544
    %v578 = vpack.c.b16 %v548, %v545
    %v579 = vpack.c.b16 %v549, %v546
    %v580 = vpack.c.b16 %v553, %v550
    %v581 = vpack.c.b16 %v554, %v551
    %v582 = vpack.c.b16 %v555, %v552
    %v583 = vpack.c.b16 %v559, %v556
    %v584 = vpack.c.b16 %v560, %v557
    %v585 = vpack.c.b16 %v561, %v558
    %610 = vmatpush.bf16.msra.mxu0 %v583
    %611 = vmatpush.bf16.msra.mxu0 %v580
    %612 = vmatpush.bf16.msra.mxu0 %v577
    %613 = vmatpush.bf16.msra.mxu0 %v574
    %614 = vmatpush.bf16.msra.mxu0 %v571
    %615 = vmatpush.bf16.msra.mxu0 %v568
    %616 = vmatpush.bf16.msra.mxu0 %v565
    %617 = vmatpush.bf16.msra.mxu0 %v562
    %618 = vmatmul.bf16.gmra.mxu0 %v441
    %v619 = vpop.f32.mrf.mxu0
    %v620 = vadd.f32 %v476, %v619
    %v621 = vpop.f32.mrf.mxu0
    %v622 = vadd.f32 %v476, %v621
    %623 = vdwg.mxu0
    %624 = vmatpush.bf16.msra.mxu0 %v584
    %625 = vmatpush.bf16.msra.mxu0 %v581
    %626 = vmatpush.bf16.msra.mxu0 %v578
    %627 = vmatpush.bf16.msra.mxu0 %v575
    %628 = vmatpush.bf16.msra.mxu0 %v572
    %629 = vmatpush.bf16.msra.mxu0 %v569
    %630 = vmatpush.bf16.msra.mxu0 %v566
    %631 = vmatpush.bf16.msra.mxu0 %v563
    %632 = vmatmul.bf16.gmra.mxu0 %v441
    %v633 = vpop.f32.mrf.mxu0
    %v634 = vadd.f32 %v477, %v633
    %v635 = vpop.f32.mrf.mxu0
    %v636 = vadd.f32 %v477, %v635
    %637 = vdwg.mxu0
    %638 = vmatpush.bf16.msra.mxu0 %v585
    %639 = vmatpush.bf16.msra.mxu0 %v582
    %640 = vmatpush.bf16.msra.mxu0 %v579
    %641 = vmatpush.bf16.msra.mxu0 %v576
    %642 = vmatpush.bf16.msra.mxu0 %v573
    %643 = vmatpush.bf16.msra.mxu0 %v570
    %644 = vmatpush.bf16.msra.mxu0 %v567
    %645 = vmatpush.bf16.msra.mxu0 %v564
    %646 = vmatmul.bf16.gmra.mxu0 %v441
    %v647 = vpop.f32.mrf.mxu0
    %v648 = vadd.f32 %v478, %v647
    %v649 = vpop.f32.mrf.mxu0
    %v650 = vadd.f32 %v478, %v649
    %651 = vdwg.mxu0
    %652 = vst [vmem:[#allocation14] sm:$0xff] %v620
    %653 = vst [vmem:[#allocation14 + $0x8] sm:$0xff] %v634
    %654 = vst [vmem:[#allocation14 + $0x10] sm:$0xff] %v648
    %655 = vst [vmem:[#allocation14 + $0x18] sm:$0xff] %v622
    %656 = vst [vmem:[#allocation14 + $0x20] sm:$0xff] %v636
    %657 = vst [vmem:[#allocation14 + $0x28] sm:$0xff] %v650
    // Predicated region
    $region74: #{tpu_custom_call.1} parent=1 // pred_check
      _
    $region75: #{tpu_custom_call.1} parent=1 // pred_check_branch
      %659 = sbr.rel (0) target = $region77
    $region76: #{tpu_custom_call.1} parent=1 // pred_region
      %661 = vsyncadd [#allocation4], 0
      %s662 = sshll.u32 [#allocation14], 4
      %s663 = int_to_ptr.vmem [resolvable:$true] %s662
      %s664 = sshll.u32 %s11, 4
      %s665 = int_to_ptr.hbm [resolvable:$true] %s664
      %670 = dma.vmem_to_hbm [thread:$0]  %s663, 768, %s665, [#allocation4], 384, 384, 24
    $region77: #{tpu_custom_call.1} parent=1 // pred_fallthru
      _
    // Predicated region
    $region78: #{tpu_custom_call.1} parent=1 // pred_check
      _
    $region79: #{tpu_custom_call.1} parent=1 // pred_check_branch
      %672 = sbr.rel (0) target = $region81
    $region80: #{tpu_custom_call.1} parent=1 // pred_region
      %674 = dma.done [#allocation4], 768
    $region81: #{tpu_custom_call.1} parent=1 // pred_fallthru
      _
    %675 = vsyncpa [#allocation3], 1
    %676 = vsyncpa [#allocation6], 1
    %677 = vsyncpa [#allocation9], 1
    %678 = vsyncpa [#allocation12], 1
    %679 = vsyncpa [#allocation4], 1

</llo_original>
